<compile_context>
chip_gen: v5e
topology: v5e:2x2
jax: 0.10.0
libtpu: 0.0.40
codegen_flags: <defaults>
</compile_context>

<pallas_src>
import functools

import jax
import jax.numpy as jnp
from jax.experimental import pallas as pl
from jax.experimental.pallas import tpu as pltpu

_LANE = 128
_SUBLANE = 8


def _round_up(n, m):
    return (n + m - 1) // m * m


# ----------------------------------------------------------------------------
# Kernel: elementwise complex multiply on lane-dense (rows, 128) tiles.
#   x blocks:      (1, R, 128)   -- one batch element, one row block
#   weight blocks: (R, 128)      -- shared across the batch grid axis (resident)
# ----------------------------------------------------------------------------
def _gf_complex_mul_kernel(xr_ref, xi_ref, wr_ref, wi_ref, yr_ref, yi_ref):
    xr = xr_ref[...]
    xi = xi_ref[...]
    wr = wr_ref[...]            # (R, 128) broadcasts against (1, R, 128)
    wi = wi_ref[...]
    yr_ref[...] = xr * wr - xi * wi
    yi_ref[...] = xr * wi + xi * wr


# ----------------------------------------------------------------------------
# GlobalFilter forward.
#   x:              (B, C, H, W) float tensor (spatial_size=None path, W == H)
#   complex_weight: (h, w, C, 2) with h == H and w == H//2 + 1
# ----------------------------------------------------------------------------
def global_filter(x, complex_weight, *, row_block=2048):
    B, C, H, W = x.shape
    a = b = H                                   # spatial_size=None path
    Wf = b // 2 + 1
    assert complex_weight.shape == (a, Wf, C, 2), (
        f"complex_weight shape {complex_weight.shape} != {(a, Wf, C, 2)}")

    # NOTE: this is a *reshape*, not a transpose — it intentionally reproduces
    # the PyTorch module's x.reshape(B, a, b, C). Do not "fix" to a permute.
    x_nhwc = jnp.reshape(x, (B, a, b, C)).astype(jnp.float32)
    xf = jnp.fft.rfft2(x_nhwc, axes=(1, 2), norm="ortho")      # (B, a, Wf, C) c64

    # ---- lane-dense flattening: pad only up to the next 128 multiple --------
    L = a * Wf * C
    rows = pl.cdiv(L, _LANE)
    Lp = rows * _LANE

    blk_rows = _round_up(min(max(int(row_block), _SUBLANE), 4096), _SUBLANE)
    if rows <= blk_rows:
        blk_rows = rows          # single block = full row dim (no 8-divisibility needed)
    n_row_blocks = pl.cdiv(rows, blk_rows)     # ragged last block handled by Pallas

    def flat_x(t):                              # (B, a, Wf, C) -> (B, rows, 128)
        t = jnp.reshape(t, (B, L))
        if Lp != L:
            t = jnp.pad(t, ((0, 0), (0, Lp - L)))
        return jnp.reshape(t, (B, rows, _LANE))

    def flat_w(t):                              # (a, Wf, C) -> (rows, 128)
        t = jnp.reshape(t.astype(jnp.float32), (L,))
        if Lp != L:
            t = jnp.pad(t, (0, Lp - L))
        return jnp.reshape(t, (rows, _LANE))

    xr_f = flat_x(jnp.real(xf))
    xi_f = flat_x(jnp.imag(xf))
    wr_f = flat_w(complex_weight[..., 0])
    wi_f = flat_w(complex_weight[..., 1])

    # Grid layout:
    #  * n_row_blocks == 1: 1-D grid over batch (weight fetched once, batch axis
    #    available for megacore sharding on v7x).
    #  * otherwise: (row_blocks, batch) with batch innermost so the weight block
    #    index is unchanged across consecutive steps -> fetched once per row
    #    block; the outer "parallel" row axis (extent >= 2) feeds megacore.
    if n_row_blocks == 1:
        grid = (B,)
        x_spec = pl.BlockSpec((1, rows, _LANE), lambda bb: (bb, 0, 0))
        w_spec = pl.BlockSpec((rows, _LANE), lambda bb: (0, 0))
        semantics = ("parallel",)
    else:
        grid = (n_row_blocks, B)
        x_spec = pl.BlockSpec((1, blk_rows, _LANE), lambda r, bb: (bb, r, 0))
        w_spec = pl.BlockSpec((blk_rows, _LANE), lambda r, bb: (r, 0))
        semantics = ("parallel", "parallel")

    cost = pl.CostEstimate(
        flops=6 * B * L,                        # 4 mul + 2 add per complex element
        transcendentals=0,
        bytes_accessed=(4 * B + 2) * Lp * 4)    # xr/xi in + yr/yi out + 2 weight slabs

    yr, yi = pl.pallas_call(
        _gf_complex_mul_kernel,
        out_shape=(jax.ShapeDtypeStruct((B, rows, _LANE), jnp.float32),
                   jax.ShapeDtypeStruct((B, rows, _LANE), jnp.float32)),
        grid_spec=pltpu.PrefetchScalarGridSpec(
            num_scalar_prefetch=0,
            grid=grid,
            in_specs=[x_spec, x_spec, w_spec, w_spec],
            out_specs=(x_spec, x_spec),
        ),
        input_output_aliases={0: 0, 1: 1},      # xr_f -> yr, xi_f -> yi (in place)
        cost_estimate=cost,
        compiler_params=pltpu.CompilerParams(
            dimension_semantics=semantics,
            allow_input_fusion=[True, True, False, False],
            vmem_limit_bytes=32 * 1024 * 1024),
    )(xr_f, xi_f, wr_f, wi_f)

    yf = jax.lax.complex(yr, yi).reshape(B, Lp)[:, :L].reshape(B, a, Wf, C)
    y = jnp.fft.irfft2(yf, s=(a, b), axes=(1, 2), norm="ortho")
    return jnp.reshape(y, (B, C, H, W)).astype(jnp.float32)


# ----------------------------------------------------------------------------
# Pure-JAX reference (mirrors the PyTorch forward) for a sanity check.
# ----------------------------------------------------------------------------
def reference_global_filter(x, complex_weight):
    B, C, H, W = x.shape
    a = b = H
    xr = jnp.reshape(x, (B, a, b, C)).astype(jnp.float32)
    xf = jnp.fft.rfft2(xr, axes=(1, 2), norm="ortho")
    wc = complex_weight[..., 0] + 1j * complex_weight[..., 1]
    y = jnp.fft.irfft2(xf * wc, s=(a, b), axes=(1, 2), norm="ortho")
    return jnp.reshape(y, (B, C, H, W)).astype(jnp.float32)


if __name__ == "__main__":
    key = jax.random.PRNGKey(0)
    kx, kw = jax.random.split(key)

    # GlobalFilter(dim=C, h=H, w=H//2+1) at small shapes (single-row-block path
    # with lane zero-padding: L=576 -> rows=5, pad=64).
    B, C, H, W = 2, 4, 16, 16
    x = jax.random.normal(kx, (B, C, H, W), jnp.float32)
    wgt = jax.random.normal(kw, (H, H // 2 + 1, C, 2), jnp.float32) * 0.02

    out = jax.block_until_ready(jax.jit(global_filter)(x, wgt))
    ref = reference_global_filter(x, wgt)
    assert out.shape == (B, C, H, W) and out.dtype == jnp.float32
    err = float(jnp.max(jnp.abs(out - ref)))
    assert err < 1e-4, f"max abs err {err}"

    # Second check: multi-row-block 2-D grid with a ragged last block
    # (rows=9, blk_rows=8 -> grid (2, B), last block has 1 valid row).
    B2, C2, H2 = 2, 8, 16
    x2 = jax.random.normal(kx, (B2, C2, H2, H2), jnp.float32)
    w2 = jax.random.normal(kw, (H2, H2 // 2 + 1, C2, 2), jnp.float32) * 0.02
    gf_small_blk = jax.jit(functools.partial(global_filter, row_block=8))
    out2 = jax.block_until_ready(gf_small_blk(x2, w2))
    err2 = float(jnp.max(jnp.abs(out2 - reference_global_filter(x2, w2))))
    assert err2 < 1e-4, f"max abs err {err2}"

    print("KERNEL_OK")
</pallas_src>

<mosaic_0001>
module attributes {stable_mosaic.version = 11 : i64} {
  func.func @_gf_complex_mul_kernel(%arg0: i32, %arg1: memref<1x5x128xf32, #tpu.memory_space<vmem>>, %arg2: memref<1x5x128xf32, #tpu.memory_space<vmem>>, %arg3: memref<5x128xf32, #tpu.memory_space<vmem>>, %arg4: memref<5x128xf32, #tpu.memory_space<vmem>>, %arg5: memref<1x5x128xf32, #tpu.memory_space<vmem>>, %arg6: memref<1x5x128xf32, #tpu.memory_space<vmem>>) attributes {dimension_semantics = [#tpu.dimension_semantics<parallel>], iteration_bounds = array<i64: 2>, scalar_prefetch = 0 : i64, scratch_operands = 0 : i64, tpu.core_type = #tpu.core_type<tc>, window_params = [{transform_indices = @transform_0, window_bounds = array<i64: 1, 5, 128>}, {transform_indices = @transform_1, window_bounds = array<i64: 1, 5, 128>}, {pipeline_mode = #tpu.pipeline_mode<synchronous>, transform_indices = @transform_2, window_bounds = array<i64: 5, 128>}, {pipeline_mode = #tpu.pipeline_mode<synchronous>, transform_indices = @transform_3, window_bounds = array<i64: 5, 128>}, {transform_indices = @transform_4, window_bounds = array<i64: 1, 5, 128>}, {transform_indices = @transform_5, window_bounds = array<i64: 1, 5, 128>}]} {
    %c0 = arith.constant 0 : index
    %c0_0 = arith.constant 0 : index
    %c0_1 = arith.constant 0 : index
    %0 = vector.load %arg1[%c0, %c0_0, %c0_1] : memref<1x5x128xf32, #tpu.memory_space<vmem>>, vector<1x5x128xf32>
    %c0_2 = arith.constant 0 : index
    %c0_3 = arith.constant 0 : index
    %c0_4 = arith.constant 0 : index
    %1 = vector.load %arg2[%c0_2, %c0_3, %c0_4] : memref<1x5x128xf32, #tpu.memory_space<vmem>>, vector<1x5x128xf32>
    %c0_5 = arith.constant 0 : index
    %c0_6 = arith.constant 0 : index
    %2 = vector.load %arg3[%c0_5, %c0_6] : memref<5x128xf32, #tpu.memory_space<vmem>>, vector<5x128xf32>
    %c0_7 = arith.constant 0 : index
    %c0_8 = arith.constant 0 : index
    %3 = vector.load %arg4[%c0_7, %c0_8] : memref<5x128xf32, #tpu.memory_space<vmem>>, vector<5x128xf32>
    %4 = vector.shape_cast %2 : vector<5x128xf32> to vector<1x5x128xf32>
    %5 = arith.mulf %0, %4 : vector<1x5x128xf32>
    %6 = vector.shape_cast %3 : vector<5x128xf32> to vector<1x5x128xf32>
    %7 = arith.mulf %1, %6 : vector<1x5x128xf32>
    %8 = arith.subf %5, %7 : vector<1x5x128xf32>
    %c0_9 = arith.constant 0 : index
    %c0_10 = arith.constant 0 : index
    %c0_11 = arith.constant 0 : index
    %9 = vector.load %arg5[%c0_9, %c0_10, %c0_11] : memref<1x5x128xf32, #tpu.memory_space<vmem>>, vector<1x5x128xf32>
    tpu.vector_store %arg5[%c0_9, %c0_10, %c0_11], %8 {strides = array<i32>} : memref<1x5x128xf32, #tpu.memory_space<vmem>>, vector<1x5x128xf32>,
    %10 = vector.shape_cast %3 : vector<5x128xf32> to vector<1x5x128xf32>
    %11 = arith.mulf %0, %10 : vector<1x5x128xf32>
    %12 = vector.shape_cast %2 : vector<5x128xf32> to vector<1x5x128xf32>
    %13 = arith.mulf %1, %12 : vector<1x5x128xf32>
    %14 = arith.addf %11, %13 : vector<1x5x128xf32>
    %c0_12 = arith.constant 0 : index
    %c0_13 = arith.constant 0 : index
    %c0_14 = arith.constant 0 : index
    %15 = vector.load %arg6[%c0_12, %c0_13, %c0_14] : memref<1x5x128xf32, #tpu.memory_space<vmem>>, vector<1x5x128xf32>
    tpu.vector_store %arg6[%c0_12, %c0_13, %c0_14], %14 {strides = array<i32>} : memref<1x5x128xf32, #tpu.memory_space<vmem>>, vector<1x5x128xf32>,
    return
  }
  func.func @transform_0(%arg0: i32) -> (i32, i32, i32) {
    %c0_i32 = arith.constant 0 : i32
    %c0_i32_0 = arith.constant 0 : i32
    %c0_i32_1 = arith.constant 0 : i32
    return %arg0, %c0_i32, %c0_i32_0 : i32, i32, i32
  }
  func.func @transform_1(%arg0: i32) -> (i32, i32, i32) {
    %c0_i32 = arith.constant 0 : i32
    %c0_i32_0 = arith.constant 0 : i32
    %c0_i32_1 = arith.constant 0 : i32
    return %arg0, %c0_i32, %c0_i32_0 : i32, i32, i32
  }
  func.func @transform_2(%arg0: i32) -> (i32, i32) {
    %c0_i32 = arith.constant 0 : i32
    %c0_i32_0 = arith.constant 0 : i32
    %c0_i32_1 = arith.constant 0 : i32
    return %c0_i32, %c0_i32_0 : i32, i32
  }
  func.func @transform_3(%arg0: i32) -> (i32, i32) {
    %c0_i32 = arith.constant 0 : i32
    %c0_i32_0 = arith.constant 0 : i32
    %c0_i32_1 = arith.constant 0 : i32
    return %c0_i32, %c0_i32_0 : i32, i32
  }
  func.func @transform_4(%arg0: i32) -> (i32, i32, i32) {
    %c0_i32 = arith.constant 0 : i32
    %c0_i32_0 = arith.constant 0 : i32
    %c0_i32_1 = arith.constant 0 : i32
    return %arg0, %c0_i32, %c0_i32_0 : i32, i32, i32
  }
  func.func @transform_5(%arg0: i32) -> (i32, i32, i32) {
    %c0_i32 = arith.constant 0 : i32
    %c0_i32_0 = arith.constant 0 : i32
    %c0_i32_1 = arith.constant 0 : i32
    return %arg0, %c0_i32, %c0_i32_0 : i32, i32, i32
  }
}

</mosaic_0001>

<llo_original>
// kernel: squeeze.3
$region0: #{squeeze.3}
  %s0 = inlined_call_operand.vmem [shape: f32[16,9,4,1], index: 0, kind: input, shape index: {}]
  %s1 = inlined_call_operand.vmem [shape: f32[576], index: 1, kind: output, shape index: {}]
  %s2 = smov 3
  %v3 = vld [vmem:[%s0] ss:$53 sm:%s2]
  %vm4 = vcmask 31744
  %5 = vst.msk [vmem:[%s1] sm:$0x3] %vm4, %v3
  %s6 = scalar_lea.vmem %s0, 113
  %s7 = smov 3
  %v8 = vld [vmem:[%s6] ss:$53 sm:%s7]
  %vm9 = vcmask 31744
  %s10 = scalar_lea.vmem %s1, 2
  %11 = vst.msk [vmem:[%s10] sm:$0x3] %vm9, %v8
  %s12 = scalar_lea.vmem %s0, 226
  %v13 = vld [vmem:[%s12] sm:$0x1]
  %vm14 = vcmask 31744
  %s15 = scalar_lea.vmem %s1, 4
  %16 = vst.msk [vmem:[%s15] sm:$0x1] %vm14, %v13
  %s17 = scalar_lea.vmem %s0, 52
  %s18 = smov 3
  %v19 = vld [vmem:[%s17] ss:$60 sm:%s18]
  %s20 = scalar_lea.vmem %s0, 45
  %s21 = smov 12
  %v22 = vld [vmem:[%s20] ss:$60 sm:%s21]
  %vm23 = vcmask 1043458
  %v24 = vsel %vm23, %v22, %v19
  %25 = vrot.lane.b32.xlu0 %v24, 124
  %v26 = vpop.permute.xlu0 %25
  %vm27 = vcmask 1048544
  %28 = vst.msk [vmem:[%s1] sm:$0xf] %vm27, %v26
  %s29 = scalar_lea.vmem %s0, 51
  %s30 = smov 3
  %v31 = vld [vmem:[%s29] ss:$53 sm:%s30]
  %s32 = scalar_lea.vmem %s0, 44
  %s33 = smov 12
  %v34 = vld [vmem:[%s32] ss:$60 sm:%s33]
  %vm35 = vcmask 1043458
  %v36 = vsel %vm35, %v34, %v31
  %37 = vrot.lane.b32.xlu0 %v36, 120
  %v38 = vpop.permute.xlu0 %37
  %vm39 = vcmask 1015744
  %40 = vst.msk [vmem:[%s1] sm:$0xf] %vm39, %v38
  %s41 = scalar_lea.vmem %s0, 50
  %s42 = smov 3
  %v43 = vld [vmem:[%s41] ss:$53 sm:%s42]
  %s44 = scalar_lea.vmem %s0, 57
  %s45 = smov 12
  %v46 = vld [vmem:[%s44] ss:$53 sm:%s45]
  %vm47 = vcmask 1043458
  %v48 = vsel %vm47, %v46, %v43
  %49 = vrot.lane.b32.xlu0 %v48, 116
  %v50 = vpop.permute.xlu0 %49
  %vm51 = vcmask 982944
  %52 = vst.msk [vmem:[%s1] sm:$0xf] %vm51, %v50
  %s53 = scalar_lea.vmem %s0, 49
  %s54 = smov 3
  %v55 = vld [vmem:[%s53] ss:$53 sm:%s54]
  %s56 = scalar_lea.vmem %s0, 56
  %s57 = smov 12
  %v58 = vld [vmem:[%s56] ss:$53 sm:%s57]
  %vm59 = vcmask 1043458
  %v60 = vsel %vm59, %v58, %v55
  %61 = vrot.lane.b32.xlu0 %v60, 112
  %v62 = vpop.permute.xlu0 %61
  %vm63 = vcmask 950144
  %64 = vst.msk [vmem:[%s1] sm:$0xf] %vm63, %v62
  %s65 = scalar_lea.vmem %s0, 48
  %s66 = smov 3
  %v67 = vld [vmem:[%s65] ss:$53 sm:%s66]
  %s68 = scalar_lea.vmem %s0, 55
  %s69 = smov 12
  %v70 = vld [vmem:[%s68] ss:$53 sm:%s69]
  %vm71 = vcmask 1043458
  %v72 = vsel %vm71, %v70, %v67
  %73 = vrot.lane.b32.xlu0 %v72, 108
  %v74 = vpop.permute.xlu0 %73
  %vm75 = vcmask 917344
  %76 = vst.msk [vmem:[%s1] sm:$0xf] %vm75, %v74
  %s77 = scalar_lea.vmem %s0, 40
  %v78 = vld [vmem:[%s77] ss:$60 sm:$0x7]
  %s79 = scalar_lea.vmem %s0, 210
  %v80 = vld [vmem:[%s79] sm:$0x8]
  %vm81 = vcmask 1043459
  %v82 = vsel %vm81, %v80, %v78
  %83 = vrot.lane.b32.xlu0 %v82, 104
  %v84 = vpop.permute.xlu0 %83
  %vm85 = vcmask 884544
  %86 = vst.msk [vmem:[%s1] sm:$0xf] %vm85, %v84
  %s87 = scalar_lea.vmem %s0, 39
  %s88 = smov 3
  %v89 = vld [vmem:[%s87] ss:$60 sm:%s88]
  %s90 = scalar_lea.vmem %s0, 32
  %s91 = smov 12
  %v92 = vld [vmem:[%s90] ss:$60 sm:%s91]
  %vm93 = vcmask 1043458
  %v94 = vsel %vm93, %v92, %v89
  %95 = vrot.lane.b32.xlu0 %v94, 100
  %v96 = vpop.permute.xlu0 %95
  %vm97 = vcmask 851744
  %98 = vst.msk [vmem:[%s1] sm:$0xf] %vm97, %v96
  %s99 = scalar_lea.vmem %s0, 38
  %s100 = smov 3
  %v101 = vld [vmem:[%s99] ss:$60 sm:%s100]
  %s102 = scalar_lea.vmem %s0, 31
  %s103 = smov 12
  %v104 = vld [vmem:[%s102] ss:$60 sm:%s103]
  %vm105 = vcmask 1043458
  %v106 = vsel %vm105, %v104, %v101
  %107 = vrot.lane.b32.xlu0 %v106, 96
  %v108 = vpop.permute.xlu0 %107
  %vm109 = vcmask 818944
  %110 = vst.msk [vmem:[%s1] sm:$0xf] %vm109, %v108
  %s111 = scalar_lea.vmem %s0, 37
  %s112 = smov 3
  %v113 = vld [vmem:[%s111] ss:$60 sm:%s112]
  %s114 = scalar_lea.vmem %s0, 30
  %s115 = smov 12
  %v116 = vld [vmem:[%s114] ss:$60 sm:%s115]
  %vm117 = vcmask 1043458
  %v118 = vsel %vm117, %v116, %v113
  %119 = vrot.lane.b32.xlu0 %v118, 92
  %v120 = vpop.permute.xlu0 %119
  %vm121 = vcmask 786144
  %122 = vst.msk [vmem:[%s1] sm:$0xf] %vm121, %v120
  %s123 = scalar_lea.vmem %s0, 36
  %s124 = smov 3
  %v125 = vld [vmem:[%s123] ss:$60 sm:%s124]
  %s126 = scalar_lea.vmem %s0, 29
  %s127 = smov 12
  %v128 = vld [vmem:[%s126] ss:$60 sm:%s127]
  %vm129 = vcmask 1043458
  %v130 = vsel %vm129, %v128, %v125
  %131 = vrot.lane.b32.xlu0 %v130, 88
  %v132 = vpop.permute.xlu0 %131
  %vm133 = vcmask 753344
  %134 = vst.msk [vmem:[%s1] sm:$0xf] %vm133, %v132
  %s135 = scalar_lea.vmem %s0, 35
  %s136 = smov 3
  %v137 = vld [vmem:[%s135] ss:$53 sm:%s136]
  %s138 = scalar_lea.vmem %s0, 28
  %s139 = smov 12
  %v140 = vld [vmem:[%s138] ss:$60 sm:%s139]
  %vm141 = vcmask 1043458
  %v142 = vsel %vm141, %v140, %v137
  %143 = vrot.lane.b32.xlu0 %v142, 84
  %v144 = vpop.permute.xlu0 %143
  %vm145 = vcmask 720544
  %146 = vst.msk [vmem:[%s1] sm:$0xf] %vm145, %v144
  %s147 = scalar_lea.vmem %s0, 34
  %s148 = smov 3
  %v149 = vld [vmem:[%s147] ss:$53 sm:%s148]
  %s150 = scalar_lea.vmem %s0, 41
  %s151 = smov 12
  %v152 = vld [vmem:[%s150] ss:$53 sm:%s151]
  %vm153 = vcmask 1043458
  %v154 = vsel %vm153, %v152, %v149
  %155 = vrot.lane.b32.xlu0 %v154, 80
  %v156 = vpop.permute.xlu0 %155
  %vm157 = vcmask 687744
  %158 = vst.msk [vmem:[%s1] sm:$0xf] %vm157, %v156
  %s159 = scalar_lea.vmem %s0, 33
  %s160 = smov 3
  %v161 = vld [vmem:[%s159] ss:$53 sm:%s160]
  %s162 = scalar_lea.vmem %s0, 40
  %s163 = smov 12
  %v164 = vld [vmem:[%s162] ss:$53 sm:%s163]
  %vm165 = vcmask 1043458
  %v166 = vsel %vm165, %v164, %v161
  %167 = vrot.lane.b32.xlu0 %v166, 76
  %v168 = vpop.permute.xlu0 %167
  %vm169 = vcmask 654944
  %170 = vst.msk [vmem:[%s1] sm:$0xf] %vm169, %v168
  %s171 = scalar_lea.vmem %s0, 32
  %s172 = smov 3
  %v173 = vld [vmem:[%s171] ss:$53 sm:%s172]
  %s174 = scalar_lea.vmem %s0, 39
  %s175 = smov 12
  %v176 = vld [vmem:[%s174] ss:$53 sm:%s175]
  %vm177 = vcmask 1043458
  %v178 = vsel %vm177, %v176, %v173
  %179 = vrot.lane.b32.xlu0 %v178, 72
  %v180 = vpop.permute.xlu0 %179
  %vm181 = vcmask 622144
  %182 = vst.msk [vmem:[%s1] sm:$0xf] %vm181, %v180
  %s183 = scalar_lea.vmem %s0, 24
  %v184 = vld [vmem:[%s183] ss:$60 sm:$0x7]
  %s185 = scalar_lea.vmem %s0, 194
  %v186 = vld [vmem:[%s185] sm:$0x8]
  %vm187 = vcmask 1043459
  %v188 = vsel %vm187, %v186, %v184
  %189 = vrot.lane.b32.xlu0 %v188, 68
  %v190 = vpop.permute.xlu0 %189
  %vm191 = vcmask 589344
  %192 = vst.msk [vmem:[%s1] sm:$0xf] %vm191, %v190
  %s193 = scalar_lea.vmem %s0, 23
  %s194 = smov 3
  %v195 = vld [vmem:[%s193] ss:$60 sm:%s194]
  %s196 = scalar_lea.vmem %s0, 16
  %s197 = smov 12
  %v198 = vld [vmem:[%s196] ss:$60 sm:%s197]
  %vm199 = vcmask 1043458
  %v200 = vsel %vm199, %v198, %v195
  %201 = vrot.lane.b32.xlu0 %v200, 64
  %v202 = vpop.permute.xlu0 %201
  %vm203 = vcmask 556544
  %204 = vst.msk [vmem:[%s1] sm:$0xf] %vm203, %v202
  %s205 = scalar_lea.vmem %s0, 22
  %s206 = smov 3
  %v207 = vld [vmem:[%s205] ss:$60 sm:%s206]
  %s208 = scalar_lea.vmem %s0, 15
  %s209 = smov 12
  %v210 = vld [vmem:[%s208] ss:$60 sm:%s209]
  %vm211 = vcmask 1043458
  %v212 = vsel %vm211, %v210, %v207
  %s213 = scalar_lea.vmem %s0, 244
  %v214 = vld [vmem:[%s213] sm:$0x10]
  %vm215 = vcmask 1044484
  %v216 = vsel %vm215, %v214, %v212
  %217 = vrot.lane.b32.xlu0 %v216, 60
  %v218 = vpop.permute.xlu0 %217
  %vm219 = vcmask 523744
  %220 = vst.msk [vmem:[%s1] sm:$0x1f] %vm219, %v218
  %s221 = scalar_lea.vmem %s0, 21
  %s222 = smov 3
  %v223 = vld [vmem:[%s221] ss:$60 sm:%s222]
  %s224 = scalar_lea.vmem %s0, 14
  %s225 = smov 12
  %v226 = vld [vmem:[%s224] ss:$60 sm:%s225]
  %vm227 = vcmask 1043458
  %v228 = vsel %vm227, %v226, %v223
  %s229 = scalar_lea.vmem %s0, 243
  %v230 = vld [vmem:[%s229] sm:$0x10]
  %vm231 = vcmask 1044484
  %v232 = vsel %vm231, %v230, %v228
  %233 = vrot.lane.b32.xlu0 %v232, 56
  %v234 = vpop.permute.xlu0 %233
  %vm235 = vcmask 490944
  %236 = vst.msk [vmem:[%s1] sm:$0x1f] %vm235, %v234
  %s237 = scalar_lea.vmem %s0, 20
  %s238 = smov 3
  %v239 = vld [vmem:[%s237] ss:$60 sm:%s238]
  %s240 = scalar_lea.vmem %s0, 13
  %s241 = smov 12
  %v242 = vld [vmem:[%s240] ss:$60 sm:%s241]
  %vm243 = vcmask 1043458
  %v244 = vsel %vm243, %v242, %v239
  %s245 = scalar_lea.vmem %s0, 242
  %v246 = vld [vmem:[%s245] sm:$0x10]
  %vm247 = vcmask 1044484
  %v248 = vsel %vm247, %v246, %v244
  %249 = vrot.lane.b32.xlu0 %v248, 52
  %v250 = vpop.permute.xlu0 %249
  %vm251 = vcmask 458144
  %252 = vst.msk [vmem:[%s1] sm:$0x1f] %vm251, %v250
  %s253 = scalar_lea.vmem %s0, 19
  %s254 = smov 3
  %v255 = vld [vmem:[%s253] ss:$53 sm:%s254]
  %s256 = scalar_lea.vmem %s0, 12
  %s257 = smov 12
  %v258 = vld [vmem:[%s256] ss:$60 sm:%s257]
  %vm259 = vcmask 1043458
  %v260 = vsel %vm259, %v258, %v255
  %s261 = scalar_lea.vmem %s0, 241
  %v262 = vld [vmem:[%s261] sm:$0x10]
  %vm263 = vcmask 1044484
  %v264 = vsel %vm263, %v262, %v260
  %265 = vrot.lane.b32.xlu0 %v264, 48
  %v266 = vpop.permute.xlu0 %265
  %vm267 = vcmask 425344
  %268 = vst.msk [vmem:[%s1] sm:$0x1f] %vm267, %v266
  %s269 = scalar_lea.vmem %s0, 18
  %s270 = smov 3
  %v271 = vld [vmem:[%s269] ss:$53 sm:%s270]
  %s272 = scalar_lea.vmem %s0, 25
  %s273 = smov 12
  %v274 = vld [vmem:[%s272] ss:$53 sm:%s273]
  %vm275 = vcmask 1043458
  %v276 = vsel %vm275, %v274, %v271
  %s277 = scalar_lea.vmem %s0, 240
  %v278 = vld [vmem:[%s277] sm:$0x10]
  %vm279 = vcmask 1044484
  %v280 = vsel %vm279, %v278, %v276
  %281 = vrot.lane.b32.xlu0 %v280, 44
  %v282 = vpop.permute.xlu0 %281
  %vm283 = vcmask 392544
  %284 = vst.msk [vmem:[%s1] sm:$0x1f] %vm283, %v282
  %s285 = scalar_lea.vmem %s0, 17
  %s286 = smov 3
  %v287 = vld [vmem:[%s285] ss:$53 sm:%s286]
  %s288 = scalar_lea.vmem %s0, 24
  %s289 = smov 12
  %v290 = vld [vmem:[%s288] ss:$53 sm:%s289]
  %vm291 = vcmask 1043458
  %v292 = vsel %vm291, %v290, %v287
  %s293 = scalar_lea.vmem %s0, 239
  %v294 = vld [vmem:[%s293] sm:$0x10]
  %vm295 = vcmask 1044484
  %v296 = vsel %vm295, %v294, %v292
  %297 = vrot.lane.b32.xlu0 %v296, 40
  %v298 = vpop.permute.xlu0 %297
  %vm299 = vcmask 359744
  %300 = vst.msk [vmem:[%s1] sm:$0x1f] %vm299, %v298
  %s301 = scalar_lea.vmem %s0, 16
  %s302 = smov 3
  %v303 = vld [vmem:[%s301] ss:$53 sm:%s302]
  %s304 = scalar_lea.vmem %s0, 23
  %s305 = smov 12
  %v306 = vld [vmem:[%s304] ss:$53 sm:%s305]
  %vm307 = vcmask 1043458
  %v308 = vsel %vm307, %v306, %v303
  %s309 = scalar_lea.vmem %s0, 238
  %v310 = vld [vmem:[%s309] sm:$0x10]
  %vm311 = vcmask 1044484
  %v312 = vsel %vm311, %v310, %v308
  %313 = vrot.lane.b32.xlu0 %v312, 36
  %v314 = vpop.permute.xlu0 %313
  %vm315 = vcmask 326944
  %316 = vst.msk [vmem:[%s1] sm:$0x1f] %vm315, %v314
  %s317 = scalar_lea.vmem %s0, 8
  %v318 = vld [vmem:[%s317] ss:$60 sm:$0x7]
  %s319 = scalar_lea.vmem %s0, 1
  %s320 = smov 24
  %v321 = vld [vmem:[%s319] ss:$60 sm:%s320]
  %vm322 = vcmask 1044483
  %v323 = vsel %vm322, %v321, %v318
  %324 = vrot.lane.b32.xlu0 %v323, 32
  %v325 = vpop.permute.xlu0 %324
  %vm326 = vcmask 294144
  %327 = vst.msk [vmem:[%s1] sm:$0x1f] %vm326, %v325
  %s328 = scalar_lea.vmem %s0, 7
  %s329 = smov 3
  %v330 = vld [vmem:[%s328] ss:$60 sm:%s329]
  %v331 = vld [vmem:[%s0] ss:$60 sm:$0x1c]
  %vm332 = vcmask 1044482
  %v333 = vsel %vm332, %v331, %v330
  %334 = vrot.lane.b32.xlu0 %v333, 28
  %v335 = vpop.permute.xlu0 %334
  %vm336 = vcmask 261344
  %337 = vst.msk [vmem:[%s1] sm:$0x1f] %vm336, %v335
  %s338 = scalar_lea.vmem %s0, 6
  %s339 = smov 3
  %v340 = vld [vmem:[%s338] ss:$60 sm:%s339]
  %s341 = scalar_lea.vmem %s0, 4294967295
  %s342 = smov 12
  %v343 = vld [vmem:[%s341] ss:$60 sm:%s342]
  %vm344 = vcmask 1043458
  %v345 = vsel %vm344, %v343, %v340
  %s346 = scalar_lea.vmem %s0, 228
  %v347 = vld [vmem:[%s346] sm:$0x10]
  %vm348 = vcmask 1044484
  %v349 = vsel %vm348, %v347, %v345
  %350 = vrot.lane.b32.xlu0 %v349, 24
  %v351 = vpop.permute.xlu0 %350
  %vm352 = vcmask 228544
  %353 = vst.msk [vmem:[%s1] sm:$0x1f] %vm352, %v351
  %s354 = scalar_lea.vmem %s0, 5
  %s355 = smov 3
  %v356 = vld [vmem:[%s354] ss:$60 sm:%s355]
  %s357 = scalar_lea.vmem %s0, 4294967294
  %s358 = smov 12
  %v359 = vld [vmem:[%s357] ss:$60 sm:%s358]
  %vm360 = vcmask 1043458
  %v361 = vsel %vm360, %v359, %v356
  %s362 = scalar_lea.vmem %s0, 227
  %v363 = vld [vmem:[%s362] sm:$0x10]
  %vm364 = vcmask 1044484
  %v365 = vsel %vm364, %v363, %v361
  %366 = vrot.lane.b32.xlu0 %v365, 20
  %v367 = vpop.permute.xlu0 %366
  %vm368 = vcmask 195744
  %369 = vst.msk [vmem:[%s1] sm:$0x1f] %vm368, %v367
  %s370 = scalar_lea.vmem %s0, 4
  %s371 = smov 3
  %v372 = vld [vmem:[%s370] ss:$60 sm:%s371]
  %s373 = scalar_lea.vmem %s0, 4294967293
  %s374 = smov 12
  %v375 = vld [vmem:[%s373] ss:$60 sm:%s374]
  %vm376 = vcmask 1043458
  %v377 = vsel %vm376, %v375, %v372
  %s378 = scalar_lea.vmem %s0, 226
  %v379 = vld [vmem:[%s378] sm:$0x10]
  %vm380 = vcmask 1044484
  %v381 = vsel %vm380, %v379, %v377
  %382 = vrot.lane.b32.xlu0 %v381, 16
  %v383 = vpop.permute.xlu0 %382
  %vm384 = vcmask 162944
  %385 = vst.msk [vmem:[%s1] sm:$0x1f] %vm384, %v383
  %s386 = scalar_lea.vmem %s0, 3
  %s387 = smov 3
  %v388 = vld [vmem:[%s386] ss:$53 sm:%s387]
  %s389 = scalar_lea.vmem %s0, 4294967292
  %s390 = smov 12
  %v391 = vld [vmem:[%s389] ss:$60 sm:%s390]
  %vm392 = vcmask 1043458
  %v393 = vsel %vm392, %v391, %v388
  %s394 = scalar_lea.vmem %s0, 225
  %v395 = vld [vmem:[%s394] sm:$0x10]
  %vm396 = vcmask 1044484
  %v397 = vsel %vm396, %v395, %v393
  %398 = vrot.lane.b32.xlu0 %v397, 12
  %v399 = vpop.permute.xlu0 %398
  %vm400 = vcmask 130144
  %401 = vst.msk [vmem:[%s1] sm:$0x1f] %vm400, %v399
  %s402 = scalar_lea.vmem %s0, 2
  %s403 = smov 3
  %v404 = vld [vmem:[%s402] ss:$53 sm:%s403]
  %s405 = scalar_lea.vmem %s0, 9
  %s406 = smov 12
  %v407 = vld [vmem:[%s405] ss:$53 sm:%s406]
  %vm408 = vcmask 1043458
  %v409 = vsel %vm408, %v407, %v404
  %s410 = scalar_lea.vmem %s0, 224
  %v411 = vld [vmem:[%s410] sm:$0x10]
  %vm412 = vcmask 1044484
  %v413 = vsel %vm412, %v411, %v409
  %414 = vrot.lane.b32.xlu0 %v413, 8
  %v415 = vpop.permute.xlu0 %414
  %vm416 = vcmask 97344
  %417 = vst.msk [vmem:[%s1] sm:$0x1f] %vm416, %v415
  %s418 = scalar_lea.vmem %s0, 1
  %s419 = smov 3
  %v420 = vld [vmem:[%s418] ss:$53 sm:%s419]
  %s421 = scalar_lea.vmem %s0, 8
  %s422 = smov 12
  %v423 = vld [vmem:[%s421] ss:$53 sm:%s422]
  %vm424 = vcmask 1043458
  %v425 = vsel %vm424, %v423, %v420
  %s426 = scalar_lea.vmem %s0, 223
  %v427 = vld [vmem:[%s426] sm:$0x10]
  %vm428 = vcmask 1044484
  %v429 = vsel %vm428, %v427, %v425
  %430 = vrot.lane.b32.xlu0 %v429, 4
  %v431 = vpop.permute.xlu0 %430
  %vm432 = vcmask 64544
  %433 = vst.msk [vmem:[%s1] sm:$0x1f] %vm432, %v431

// kernel: global_filter.1
$region0: #{global_filter.1}
  #allocation0 [shape = 'u32[]', space=smem, size = 0x4, offset = 0x4, fixed_abs, tag = 'smem constant byte address 0x4 - core index']
  #allocation1 [shape = 'u32[72,128]{1,0:T(1,128)}', space=vmem, size = 0x9000, scoped, tag = 'internal scratch']
  %s0 = inlined_call_operand.vmem [shape: f32[2,5,128], index: 0, kind: input, shape index: {}, may-alias: {0,4}]
  %s1 = inlined_call_operand.vmem [shape: f32[2,5,128], index: 1, kind: input, shape index: {}, may-alias: {1,5}]
  %s2 = inlined_call_operand.vmem [shape: f32[5,128], index: 2, kind: input, shape index: {}]
  %s3 = inlined_call_operand.vmem [shape: f32[5,128], index: 3, kind: input, shape index: {}]
  %s4 = inlined_call_operand.vmem [shape: f32[2,5,128], index: 4, kind: output, shape index: {0}, may-alias: {0,4}]
  %s5 = inlined_call_operand.vmem [shape: f32[2,5,128], index: 5, kind: output, shape index: {1}, may-alias: {1,5}]
  %6 = xla_tuple %s4, %s5
  %s7 = sld [smem:[#allocation0]]
  $region57: #{global_filter.1} parent=0
    _
  %s9 = ssub.s32 1, %s7
  %s10 = scalar_select 0, %s9, %s7
  loop: start=0, step=1, limit=4
  $region2: #{global_filter.1} parent=0 // loop_pre_header
    _
  $region3: #{global_filter.1} parent=0 // loop_header
    %s12 = sphi 0, %s16
    %p13 = scmp.ge.s32.totalorder %s12, 4
    %s22 = sphi 0, %s24
    %s25 = sphi 0, %s22
    %s26 = sphi 0, %s25
    %s42 = sphi 0, %s26
    %s48 = sphi 0, %s50
    %s51 = sphi 0, %s48
    %s52 = sphi 0, %s51
    %s68 = sphi 0, %s52
    %s72 = sphi 0, %s72
    %s74 = sphi 0, %s72
    %s75 = sphi 0, %s74
    %s89 = sphi 0, %s75
    %s93 = sphi 0, %s93
    %s95 = sphi 0, %s93
    %s96 = sphi 0, %s95
    %s110 = sphi 0, %s96
    %s116 = sphi 0, %s118
    %s119 = sphi 0, %s116
    %s120 = sphi 0, %s119
    %s136 = sphi 0, %s120
    %s142 = sphi 0, %s144
    %s145 = sphi 0, %s142
    %s146 = sphi 0, %s145
    %s162 = sphi 0, %s146
  $region4: #{global_filter.1} parent=0 // loop_header_branch
    %15 = sbr.rel (%p13) target = $region8
  $region5: #{global_filter.1} parent=0 // loop_body
    %s17 = ssub.s32 %s12, 1
    %s18 = ssub.s32 %s12, 2
    %s19 = sadd.s32 %s12, 1
    %s20 = ssub.s32 %s12, %s19
    %p21 = scmp.eq.s32.totalorder %s20, 0
    %s23 = sadd.s32 %s22, 1
    %s24 = scalar_select %p21, %s22, %s23
    %p27 = pneg %p21
    %p28 = scmp.eq.s32.totalorder %s12, 1
    %p29 = por %p27, %p28
    %p30 = scmp.ne.s32.totalorder %s22, %s25
    %p31 = scmp.eq.s32.totalorder %s12, 0
    %p32 = por %p30, %p31
    %p33 = scmp.ne.s32.totalorder %s22, %s25
    %p34 = scmp.eq.s32.totalorder %s17, 1
    %p35 = por %p33, %p34
    %p36 = scmp.ne.s32.totalorder %s25, %s26
    %p37 = scmp.eq.s32.totalorder %s17, 0
    %p38 = por %p36, %p37
    %p39 = scmp.ne.s32.totalorder %s25, %s26
    %p40 = scmp.eq.s32.totalorder %s18, 1
    %p41 = por %p39, %p40
    %p43 = scmp.ne.s32.totalorder %s26, %s42
    %p44 = scmp.eq.s32.totalorder %s18, 0
    %p45 = por %p43, %p44
    %s46 = ssub.s32 %s12, %s19
    %p47 = scmp.eq.s32.totalorder %s46, 0
    %s49 = sadd.s32 %s48, 1
    %s50 = scalar_select %p47, %s48, %s49
    %p53 = pneg %p47
    %p54 = scmp.eq.s32.totalorder %s12, 1
    %p55 = por %p53, %p54
    %p56 = scmp.ne.s32.totalorder %s48, %s51
    %p57 = scmp.eq.s32.totalorder %s12, 0
    %p58 = por %p56, %p57
    %p59 = scmp.ne.s32.totalorder %s48, %s51
    %p60 = scmp.eq.s32.totalorder %s17, 1
    %p61 = por %p59, %p60
    %p62 = scmp.ne.s32.totalorder %s51, %s52
    %p63 = scmp.eq.s32.totalorder %s17, 0
    %p64 = por %p62, %p63
    %p65 = scmp.ne.s32.totalorder %s51, %s52
    %p66 = scmp.eq.s32.totalorder %s18, 1
    %p67 = por %p65, %p66
    %p69 = scmp.ne.s32.totalorder %s52, %s68
    %p70 = scmp.eq.s32.totalorder %s18, 0
    %p71 = por %p69, %p70
    %s73 = sadd.s32 %s72, 1
    %p76 = scmp.eq.s32.totalorder %s12, 1
    %p77 = scmp.ne.s32.totalorder %s72, %s74
    %p78 = scmp.eq.s32.totalorder %s12, 0
    %p79 = por %p77, %p78
    %p80 = scmp.ne.s32.totalorder %s72, %s74
    %p81 = scmp.eq.s32.totalorder %s17, 1
    %p82 = por %p80, %p81
    %p83 = scmp.ne.s32.totalorder %s74, %s75
    %p84 = scmp.eq.s32.totalorder %s17, 0
    %p85 = por %p83, %p84
    %p86 = scmp.ne.s32.totalorder %s74, %s75
    %p87 = scmp.eq.s32.totalorder %s18, 1
    %p88 = por %p86, %p87
    %p90 = scmp.ne.s32.totalorder %s75, %s89
    %p91 = scmp.eq.s32.totalorder %s18, 0
    %p92 = por %p90, %p91
    %s94 = sadd.s32 %s93, 1
    %p97 = scmp.eq.s32.totalorder %s12, 1
    %p98 = scmp.ne.s32.totalorder %s93, %s95
    %p99 = scmp.eq.s32.totalorder %s12, 0
    %p100 = por %p98, %p99
    %p101 = scmp.ne.s32.totalorder %s93, %s95
    %p102 = scmp.eq.s32.totalorder %s17, 1
    %p103 = por %p101, %p102
    %p104 = scmp.ne.s32.totalorder %s95, %s96
    %p105 = scmp.eq.s32.totalorder %s17, 0
    %p106 = por %p104, %p105
    %p107 = scmp.ne.s32.totalorder %s95, %s96
    %p108 = scmp.eq.s32.totalorder %s18, 1
    %p109 = por %p107, %p108
    %p111 = scmp.ne.s32.totalorder %s96, %s110
    %p112 = scmp.eq.s32.totalorder %s18, 0
    %p113 = por %p111, %p112
    %s114 = ssub.s32 %s12, %s19
    %p115 = scmp.eq.s32.totalorder %s114, 0
    %s117 = sadd.s32 %s116, 1
    %s118 = scalar_select %p115, %s116, %s117
    %p121 = pneg %p115
    %p122 = scmp.eq.s32.totalorder %s12, 1
    %p123 = por %p121, %p122
    %p124 = scmp.ne.s32.totalorder %s116, %s119
    %p125 = scmp.eq.s32.totalorder %s12, 0
    %p126 = por %p124, %p125
    %p127 = scmp.ne.s32.totalorder %s116, %s119
    %p128 = scmp.eq.s32.totalorder %s17, 1
    %p129 = por %p127, %p128
    %p130 = scmp.ne.s32.totalorder %s119, %s120
    %p131 = scmp.eq.s32.totalorder %s17, 0
    %p132 = por %p130, %p131
    %p133 = scmp.ne.s32.totalorder %s119, %s120
    %p134 = scmp.eq.s32.totalorder %s18, 1
    %p135 = por %p133, %p134
    %p137 = scmp.ne.s32.totalorder %s120, %s136
    %p138 = scmp.eq.s32.totalorder %s18, 0
    %p139 = por %p137, %p138
    %s140 = ssub.s32 %s12, %s19
    %p141 = scmp.eq.s32.totalorder %s140, 0
    %s143 = sadd.s32 %s142, 1
    %s144 = scalar_select %p141, %s142, %s143
    %p147 = pneg %p141
    %p148 = scmp.eq.s32.totalorder %s12, 1
    %p149 = por %p147, %p148
    %p150 = scmp.ne.s32.totalorder %s142, %s145
    %p151 = scmp.eq.s32.totalorder %s12, 0
    %p152 = por %p150, %p151
    %p153 = scmp.ne.s32.totalorder %s142, %s145
    %p154 = scmp.eq.s32.totalorder %s17, 1
    %p155 = por %p153, %p154
    %p156 = scmp.ne.s32.totalorder %s145, %s146
    %p157 = scmp.eq.s32.totalorder %s17, 0
    %p158 = por %p156, %p157
    %p159 = scmp.ne.s32.totalorder %s145, %s146
    %p160 = scmp.eq.s32.totalorder %s18, 1
    %p161 = por %p159, %p160
    %p163 = scmp.ne.s32.totalorder %s146, %s162
    %p164 = scmp.eq.s32.totalorder %s18, 0
    %p165 = por %p163, %p164
    %p166 = scmp.le.s32.totalorder 1, %s12
    %p167 = scmp.lt.s32.totalorder %s12, 3
    %p168 = pnand %p166, %p167
    %p169 = pneg %p168
    // Predicated region
    $region9: #{global_filter.1} parent=5 // pred_check
      _
    $region10: #{global_filter.1} parent=5 // pred_check_branch
      %171 = sbr.rel (%p168) target = $region12
    $region11: #{global_filter.1} parent=5 // pred_region
      %s172 = ssub.s32 %s12, 1
      // Predicated region
      $region13: #{global_filter.1} parent=11 // pred_check
        %p173 = pneg %p85
      $region14: #{global_filter.1} parent=11 // pred_check_branch
        %175 = sbr.rel (%p173) target = $region16
      $region15: #{global_filter.1} parent=11 // pred_region
        _
      $region16: #{global_filter.1} parent=11 // pred_fallthru
        _
      // Predicated region
      $region17: #{global_filter.1} parent=11 // pred_check
        %p176 = pneg %p106
      $region18: #{global_filter.1} parent=11 // pred_check_branch
        %178 = sbr.rel (%p176) target = $region20
      $region19: #{global_filter.1} parent=11 // pred_region
        _
      $region20: #{global_filter.1} parent=11 // pred_fallthru
        _
    $region12: #{global_filter.1} parent=5 // pred_fallthru
      _
    %p179 = scmp.lt.s32.totalorder %s12, 2
    // Predicated region
    $region21: #{global_filter.1} parent=5 // pred_check
      %p180 = pneg %p179
    $region22: #{global_filter.1} parent=5 // pred_check_branch
      %182 = sbr.rel (%p180) target = $region24
    $region23: #{global_filter.1} parent=5 // pred_region
      // Predicated region
      $region25: #{global_filter.1} parent=23 // pred_check
        %p183 = pneg %p32
      $region26: #{global_filter.1} parent=23 // pred_check_branch
        %185 = sbr.rel (%p183) target = $region28
      $region27: #{global_filter.1} parent=23 // pred_region
        %p186 = scmp.lt.s32.totalorder %s12, 1
        %s187 = scalar_select %p186, %s12, 1
        %s188 = smul.addr %s187, 8
        %s189 = scalar_lea.vmem %s0, %s188
      $region28: #{global_filter.1} parent=23 // pred_fallthru
        _
      // Predicated region
      $region29: #{global_filter.1} parent=23 // pred_check
        %p190 = pneg %p58
      $region30: #{global_filter.1} parent=23 // pred_check_branch
        %192 = sbr.rel (%p190) target = $region32
      $region31: #{global_filter.1} parent=23 // pred_region
        %p193 = scmp.lt.s32.totalorder %s12, 1
        %s194 = scalar_select %p193, %s12, 1
        %s195 = smul.addr %s194, 8
        %s196 = scalar_lea.vmem %s1, %s195
      $region32: #{global_filter.1} parent=23 // pred_fallthru
        _
    $region24: #{global_filter.1} parent=5 // pred_fallthru
      _
    %p197 = scmp.le.s32.totalorder 1, %s12
    %p198 = scmp.lt.s32.totalorder %s12, 3
    %p199 = pnand %p197, %p198
    %p200 = pneg %p199
    // Predicated region
    $region33: #{global_filter.1} parent=5 // pred_check
      _
    $region34: #{global_filter.1} parent=5 // pred_check_branch
      %202 = sbr.rel (%p199) target = $region36
    $region35: #{global_filter.1} parent=5 // pred_region
      %s203 = ssub.s32 %s12, 1
      %p204 = scmp.lt.s32.totalorder %s17, 1
      %s205 = scalar_select %p204, %s17, 1
      %s206 = smul.addr %s205, 8
      %s207 = scalar_lea.vmem %s0, %s206
      %p208 = pneg %p38
      %p209 = pneg %p35
      %p210 = scmp.lt.s32.totalorder %s17, 1
      %s211 = scalar_select %p210, %s17, 1
      %s212 = smul.addr %s211, 8
      %s213 = scalar_lea.vmem %s1, %s212
      %p214 = pneg %p64
      %p215 = pneg %p61
      %p216 = pneg %p85
      %p217 = pneg %p82
      %p218 = pneg %p106
      %p219 = pneg %p103
      %p220 = pneg %p132
      %p221 = pneg %p129
      %p222 = scmp.lt.s32.totalorder %s17, 1
      %s223 = scalar_select %p222, %s17, 1
      %s224 = smul.addr %s223, 8
      %s225 = scalar_lea.vmem %s4, %s224
      %p226 = pneg %p158
      %p227 = pneg %p155
      %p228 = scmp.lt.s32.totalorder %s17, 1
      %s229 = scalar_select %p228, %s17, 1
      %s230 = smul.addr %s229, 8
      %s231 = scalar_lea.vmem %s5, %s230
      %p232 = scmp.lt.s32.totalorder %s17, 1
      %s233 = scalar_select %p232, %s17, 1
      %s234 = smul.addr %s233, 8
      %s235 = scalar_lea.vmem %s0, %s234
      %p236 = scmp.lt.s32.totalorder %s17, 1
      %s237 = scalar_select %p236, %s17, 1
      %s238 = smul.addr %s237, 8
      %s239 = scalar_lea.vmem %s1, %s238
      %p240 = scmp.lt.s32.totalorder %s17, 1
      %s241 = scalar_select %p240, %s17, 1
      %s242 = smul.addr %s241, 8
      %s243 = scalar_lea.vmem %s4, %s242
      %p244 = scmp.lt.s32.totalorder %s17, 1
      %s245 = scalar_select %p244, %s17, 1
      %s246 = smul.addr %s245, 8
      %s247 = scalar_lea.vmem %s5, %s246
      %v248 = vld [vmem:[%s235] sm:$0x1f]
      %v249 = vld [vmem:[%s239] sm:$0x1f]
      %v250 = vld [vmem:[%s2] sm:$0x1f]
      %v251 = vld [vmem:[%s3] sm:$0x1f]
      %v252 = vmul.f32 %v248, %v250
      %v253 = vmul.f32 %v249, %v251
      %v254 = vsub.f32 %v252, %v253
      %255 = vst [vmem:[%s243] sm:$0x1f] %v254
      %v256 = vmul.f32 %v248, %v251
      %v257 = vmul.f32 %v249, %v250
      %v258 = vadd.f32 %v256, %v257
      %259 = vst [vmem:[%s247] sm:$0x1f] %v258
      %p260 = scmp.lt.s32.totalorder %s17, 1
      %s261 = scalar_select %p260, %s17, 1
      %s262 = smul.addr %s261, 8
      %s263 = scalar_lea.vmem %s4, %s262
      %p264 = scmp.lt.s32.totalorder %s17, 1
      %s265 = scalar_select %p264, %s17, 1
      %s266 = smul.addr %s265, 8
      %s267 = scalar_lea.vmem %s5, %s266
      // Predicated region
      $region37: #{global_filter.1} parent=35 // pred_check
        %p268 = pneg %p129
      $region38: #{global_filter.1} parent=35 // pred_check_branch
        %270 = sbr.rel (%p268) target = $region40
      $region39: #{global_filter.1} parent=35 // pred_region
        _
      $region40: #{global_filter.1} parent=35 // pred_fallthru
        _
      // Predicated region
      $region41: #{global_filter.1} parent=35 // pred_check
        %p271 = pneg %p155
      $region42: #{global_filter.1} parent=35 // pred_check_branch
        %273 = sbr.rel (%p271) target = $region44
      $region43: #{global_filter.1} parent=35 // pred_region
        _
      $region44: #{global_filter.1} parent=35 // pred_fallthru
        _
    $region36: #{global_filter.1} parent=5 // pred_fallthru
      _
    %p274 = scmp.le.s32.totalorder 2, %s12
    // Predicated region
    $region45: #{global_filter.1} parent=5 // pred_check
      %p275 = pneg %p274
    $region46: #{global_filter.1} parent=5 // pred_check_branch
      %277 = sbr.rel (%p275) target = $region48
    $region47: #{global_filter.1} parent=5 // pred_region
      %s278 = ssub.s32 %s12, 2
      // Predicated region
      $region49: #{global_filter.1} parent=47 // pred_check
        %p279 = pneg %p135
      $region50: #{global_filter.1} parent=47 // pred_check_branch
        %281 = sbr.rel (%p279) target = $region52
      $region51: #{global_filter.1} parent=47 // pred_region
        %p282 = scmp.lt.s32.totalorder %s18, 1
        %s283 = scalar_select %p282, %s18, 1
        %s284 = smul.addr %s283, 8
        %s285 = scalar_lea.vmem %s4, %s284
      $region52: #{global_filter.1} parent=47 // pred_fallthru
        _
      // Predicated region
      $region53: #{global_filter.1} parent=47 // pred_check
        %p286 = pneg %p161
      $region54: #{global_filter.1} parent=47 // pred_check_branch
        %288 = sbr.rel (%p286) target = $region56
      $region55: #{global_filter.1} parent=47 // pred_region
        %p289 = scmp.lt.s32.totalorder %s18, 1
        %s290 = scalar_select %p289, %s18, 1
        %s291 = smul.addr %s290, 8
        %s292 = scalar_lea.vmem %s5, %s291
      $region56: #{global_filter.1} parent=47 // pred_fallthru
        _
    $region48: #{global_filter.1} parent=5 // pred_fallthru
      _
  $region6: #{global_filter.1} parent=0 // loop_footer
    %s16 = sadd.s32 1, %s12
  $region7: #{global_filter.1} parent=0 // loop_footer_branch
    %11 = sbr.rel target = $region3
  $region8: #{global_filter.1} parent=0 // loop_exit
    _

// kernel: reverse.0
$region0: #{reverse.0}
  %s0 = inlined_call_operand.vmem [shape: f32[2,4,16,7], index: 0, kind: input, shape index: {}]
  %s1 = inlined_call_operand.vmem [shape: f32[2,4,16,7], index: 1, kind: output, shape index: {}]
  $region1: #{reverse.0} parent=0
    #allocation0 [shape = 'u8[65536]{0}', space=vmem, size = 0x10000, scoped, tag = 'operand span for operand 0']
    #allocation1 [shape = 'u8[32768]{0}', space=vmem, size = 0x8000, scoped, tag = 'operand span for operand 1']
    %s2 = scalar_lea.vmem [#allocation0], 8
    // Predicated region
    $region2: #{reverse.0} parent=1 // pred_check
      _
    $region3: #{reverse.0} parent=1 // pred_check_branch
      %4 = sbr.rel (0) target = $region5
    $region4: #{reverse.0} parent=1 // pred_region
      // Predicated region
      $region6: #{reverse.0} parent=4 // pred_check
        _
      $region7: #{reverse.0} parent=4 // pred_check_branch
        %6 = sbr.rel (0) target = $region9
      $region8: #{reverse.0} parent=4 // pred_region
        // Predicated region
        $region21: #{reverse.0} parent=8 // pred_check
          _
        $region22: #{reverse.0} parent=8 // pred_check_branch
          %36 = sbr.rel (0) target = $region24
        $region23: #{reverse.0} parent=8 // pred_region
          loop: start=0, step=1, limit=1
          $region25: #{reverse.0} parent=23 // loop_pre_header
            _
          $region26: #{reverse.0} parent=23 // loop_header
            %s38 = sphi 0, %s42
            %p39 = scmp.ge.s32.totalorder %s38, 1
            %s43 = sphi %s0, %s0
            %s44 = sphi %s2, %s2
          $region27: #{reverse.0} parent=23 // loop_header_branch
            %41 = sbr.rel (%p39) target = $region31
          $region28: #{reverse.0} parent=23 // loop_body
            %v45 = vld [vmem:[%s43] sm:$0xff]
            %46 = vst [vmem:[%s44] sm:$0xff] %v45
            %v47 = vld [vmem:[%s43 + $0x8] sm:$0xff]
            %48 = vst [vmem:[%s44 + $0x10] sm:$0xff] %v47
            %v49 = vld [vmem:[%s43 + $0x10] sm:$0xff]
            %50 = vst [vmem:[%s44 + $0x20] sm:$0xff] %v49
            %v51 = vld [vmem:[%s43 + $0x18] sm:$0xff]
            %52 = vst [vmem:[%s44 + $0x30] sm:$0xff] %v51
            %v53 = vld [vmem:[%s43 + $0x20] sm:$0xff]
            %54 = vst [vmem:[%s44 + $0x40] sm:$0xff] %v53
            %v55 = vld [vmem:[%s43 + $0x28] sm:$0xff]
            %56 = vst [vmem:[%s44 + $0x50] sm:$0xff] %v55
            %v57 = vld [vmem:[%s43 + $0x30] sm:$0xff]
            %58 = vst [vmem:[%s44 + $0x60] sm:$0xff] %v57
            %v59 = vld [vmem:[%s43 + $0x38] sm:$0xff]
            %60 = vst [vmem:[%s44 + $0x70] sm:$0xff] %v59
          $region29: #{reverse.0} parent=23 // loop_footer
            %s42 = sadd.s32 1, %s38
          $region30: #{reverse.0} parent=23 // loop_footer_branch
            %37 = sbr.rel target = $region26
          $region31: #{reverse.0} parent=23 // loop_exit
            _
        $region24: #{reverse.0} parent=8 // pred_fallthru
          _
        // Predicated region
        $region32: #{reverse.0} parent=8 // pred_check
          _
        $region33: #{reverse.0} parent=8 // pred_check_branch
          %62 = sbr.rel target = $region35
        $region34: #{reverse.0} parent=8 // pred_region
          _
        $region35: #{reverse.0} parent=8 // pred_fallthru
          _
      $region9: #{reverse.0} parent=4 // pred_fallthru
        _
      // Predicated region
      $region10: #{reverse.0} parent=4 // pred_check
        _
      $region11: #{reverse.0} parent=4 // pred_check_branch
        %8 = sbr.rel target = $region13
      $region12: #{reverse.0} parent=4 // pred_region
        %s10 = ssub.s32 256, 1
        loop: start=0, step=1, limit=1
        $region14: #{reverse.0} parent=12 // loop_pre_header
          _
        $region15: #{reverse.0} parent=12 // loop_header
          %s12 = sphi 0, %s16
          %p13 = scmp.ge.s32.totalorder %s12, 1
          %s17 = sphi %s0, %s0
          %s18 = sphi %s2, %s2
        $region16: #{reverse.0} parent=12 // loop_header_branch
          %15 = sbr.rel (%p13) target = $region20
        $region17: #{reverse.0} parent=12 // loop_body
          %v19 = vld [vmem:[%s17] sm:%s10]
          %20 = vst [vmem:[%s18] sm:%s10] %v19
          %v21 = vld [vmem:[%s17 + $0x8] sm:%s10]
          %22 = vst [vmem:[%s18 + $0x10] sm:%s10] %v21
          %v23 = vld [vmem:[%s17 + $0x10] sm:%s10]
          %24 = vst [vmem:[%s18 + $0x20] sm:%s10] %v23
          %v25 = vld [vmem:[%s17 + $0x18] sm:%s10]
          %26 = vst [vmem:[%s18 + $0x30] sm:%s10] %v25
          %v27 = vld [vmem:[%s17 + $0x20] sm:%s10]
          %28 = vst [vmem:[%s18 + $0x40] sm:%s10] %v27
          %v29 = vld [vmem:[%s17 + $0x28] sm:%s10]
          %30 = vst [vmem:[%s18 + $0x50] sm:%s10] %v29
          %v31 = vld [vmem:[%s17 + $0x30] sm:%s10]
          %32 = vst [vmem:[%s18 + $0x60] sm:%s10] %v31
          %v33 = vld [vmem:[%s17 + $0x38] sm:%s10]
          %34 = vst [vmem:[%s18 + $0x70] sm:%s10] %v33
        $region18: #{reverse.0} parent=12 // loop_footer
          %s16 = sadd.s32 1, %s12
        $region19: #{reverse.0} parent=12 // loop_footer_branch
          %11 = sbr.rel target = $region15
        $region20: #{reverse.0} parent=12 // loop_exit
          _
      $region13: #{reverse.0} parent=4 // pred_fallthru
        _
    $region5: #{reverse.0} parent=1 // pred_fallthru
      _
    %63 = vnop
    %s64 = scalar_lea.vmem [#allocation0], 7
    %v65 = vld [vmem:[%s64] ss:$-1 sm:$0xff]
    %v66 = vrot.slane %v65, 1
    %67 = vst [vmem:[#allocation1] sm:$0xff] %v66
    %s68 = scalar_lea.vmem [#allocation0], 8
    %s69 = scalar_lea.vmem %s68, 7 [#allocation0]
    %v70 = vld [vmem:[%s69] ss:$-1 sm:$0xff]
    %v71 = vrot.slane %v70, 1
    %v72 = vlaneseq
    %v73 = vshrl.u32 %v72, 7
    %vm74 = vcmp.lt.s32.totalorder %v73, 7
    %75 = vst.msk [vmem:[#allocation1] sm:$0xff] %vm74, %v71
    %s76 = scalar_lea.vmem [#allocation1], 8
    %s77 = scalar_lea.vmem [#allocation0], 16
    %s78 = scalar_lea.vmem %s77, 7 [#allocation0]
    %v79 = vld [vmem:[%s78] ss:$-1 sm:$0xff]
    %v80 = vrot.slane %v79, 1
    %81 = vst [vmem:[%s76] sm:$0xff] %v80
    %s82 = scalar_lea.vmem %s77, 8 [#allocation0]
    %s83 = scalar_lea.vmem %s82, 7 [#allocation0]
    %v84 = vld [vmem:[%s83] ss:$-1 sm:$0xff]
    %v85 = vrot.slane %v84, 1
    %v86 = vlaneseq
    %v87 = vshrl.u32 %v86, 7
    %vm88 = vcmp.lt.s32.totalorder %v87, 7
    %89 = vst.msk [vmem:[%s76] sm:$0xff] %vm88, %v85
    %s90 = scalar_lea.vmem [#allocation1], 16
    %s91 = scalar_lea.vmem [#allocation0], 32
    %s92 = scalar_lea.vmem %s91, 7 [#allocation0]
    %v93 = vld [vmem:[%s92] ss:$-1 sm:$0xff]
    %v94 = vrot.slane %v93, 1
    %95 = vst [vmem:[%s90] sm:$0xff] %v94
    %s96 = scalar_lea.vmem %s91, 8 [#allocation0]
    %s97 = scalar_lea.vmem %s96, 7 [#allocation0]
    %v98 = vld [vmem:[%s97] ss:$-1 sm:$0xff]
    %v99 = vrot.slane %v98, 1
    %v100 = vlaneseq
    %v101 = vshrl.u32 %v100, 7
    %vm102 = vcmp.lt.s32.totalorder %v101, 7
    %103 = vst.msk [vmem:[%s90] sm:$0xff] %vm102, %v99
    %s104 = scalar_lea.vmem [#allocation1], 24
    %s105 = scalar_lea.vmem [#allocation0], 48
    %s106 = scalar_lea.vmem %s105, 7 [#allocation0]
    %v107 = vld [vmem:[%s106] ss:$-1 sm:$0xff]
    %v108 = vrot.slane %v107, 1
    %109 = vst [vmem:[%s104] sm:$0xff] %v108
    %s110 = scalar_lea.vmem %s105, 8 [#allocation0]
    %s111 = scalar_lea.vmem %s110, 7 [#allocation0]
    %v112 = vld [vmem:[%s111] ss:$-1 sm:$0xff]
    %v113 = vrot.slane %v112, 1
    %v114 = vlaneseq
    %v115 = vshrl.u32 %v114, 7
    %vm116 = vcmp.lt.s32.totalorder %v115, 7
    %117 = vst.msk [vmem:[%s104] sm:$0xff] %vm116, %v113
    %s118 = scalar_lea.vmem [#allocation1], 32
    %s119 = scalar_lea.vmem [#allocation0], 64
    %s120 = scalar_lea.vmem %s119, 7 [#allocation0]
    %v121 = vld [vmem:[%s120] ss:$-1 sm:$0xff]
    %v122 = vrot.slane %v121, 1
    %123 = vst [vmem:[%s118] sm:$0xff] %v122
    %s124 = scalar_lea.vmem %s119, 8 [#allocation0]
    %s125 = scalar_lea.vmem %s124, 7 [#allocation0]
    %v126 = vld [vmem:[%s125] ss:$-1 sm:$0xff]
    %v127 = vrot.slane %v126, 1
    %v128 = vlaneseq
    %v129 = vshrl.u32 %v128, 7
    %vm130 = vcmp.lt.s32.totalorder %v129, 7
    %131 = vst.msk [vmem:[%s118] sm:$0xff] %vm130, %v127
    %s132 = scalar_lea.vmem [#allocation1], 40
    %s133 = scalar_lea.vmem [#allocation0], 80
    %s134 = scalar_lea.vmem %s133, 7 [#allocation0]
    %v135 = vld [vmem:[%s134] ss:$-1 sm:$0xff]
    %v136 = vrot.slane %v135, 1
    %137 = vst [vmem:[%s132] sm:$0xff] %v136
    %s138 = scalar_lea.vmem %s133, 8 [#allocation0]
    %s139 = scalar_lea.vmem %s138, 7 [#allocation0]
    %v140 = vld [vmem:[%s139] ss:$-1 sm:$0xff]
    %v141 = vrot.slane %v140, 1
    %v142 = vlaneseq
    %v143 = vshrl.u32 %v142, 7
    %vm144 = vcmp.lt.s32.totalorder %v143, 7
    %145 = vst.msk [vmem:[%s132] sm:$0xff] %vm144, %v141
    %s146 = scalar_lea.vmem [#allocation1], 48
    %s147 = scalar_lea.vmem [#allocation0], 96
    %s148 = scalar_lea.vmem %s147, 7 [#allocation0]
    %v149 = vld [vmem:[%s148] ss:$-1 sm:$0xff]
    %v150 = vrot.slane %v149, 1
    %151 = vst [vmem:[%s146] sm:$0xff] %v150
    %s152 = scalar_lea.vmem %s147, 8 [#allocation0]
    %s153 = scalar_lea.vmem %s152, 7 [#allocation0]
    %v154 = vld [vmem:[%s153] ss:$-1 sm:$0xff]
    %v155 = vrot.slane %v154, 1
    %v156 = vlaneseq
    %v157 = vshrl.u32 %v156, 7
    %vm158 = vcmp.lt.s32.totalorder %v157, 7
    %159 = vst.msk [vmem:[%s146] sm:$0xff] %vm158, %v155
    %s160 = scalar_lea.vmem [#allocation1], 56
    %s161 = scalar_lea.vmem [#allocation0], 112
    %s162 = scalar_lea.vmem %s161, 7 [#allocation0]
    %v163 = vld [vmem:[%s162] ss:$-1 sm:$0xff]
    %v164 = vrot.slane %v163, 1
    %165 = vst [vmem:[%s160] sm:$0xff] %v164
    %s166 = scalar_lea.vmem %s161, 8 [#allocation0]
    %s167 = scalar_lea.vmem %s166, 7 [#allocation0]
    %v168 = vld [vmem:[%s167] ss:$-1 sm:$0xff]
    %v169 = vrot.slane %v168, 1
    %v170 = vlaneseq
    %v171 = vshrl.u32 %v170, 7
    %vm172 = vcmp.lt.s32.totalorder %v171, 7
    %173 = vst.msk [vmem:[%s160] sm:$0xff] %vm172, %v169
    // Predicated region
    $region36: #{reverse.0} parent=1 // pred_check
      _
    $region37: #{reverse.0} parent=1 // pred_check_branch
      %175 = sbr.rel (0) target = $region39
    $region38: #{reverse.0} parent=1 // pred_region
      // Predicated region
      $region40: #{reverse.0} parent=38 // pred_check
        _
      $region41: #{reverse.0} parent=38 // pred_check_branch
        %177 = sbr.rel (0) target = $region43
      $region42: #{reverse.0} parent=38 // pred_region
        // Predicated region
        $region55: #{reverse.0} parent=42 // pred_check
          _
        $region56: #{reverse.0} parent=42 // pred_check_branch
          %207 = sbr.rel (0) target = $region58
        $region57: #{reverse.0} parent=42 // pred_region
          loop: start=0, step=1, limit=1
          $region59: #{reverse.0} parent=57 // loop_pre_header
            _
          $region60: #{reverse.0} parent=57 // loop_header
            %s209 = sphi 0, %s213
            %p210 = scmp.ge.s32.totalorder %s209, 1
            %s214 = sphi [#allocation1], [#allocation1]
            %s215 = sphi %s1, %s1
          $region61: #{reverse.0} parent=57 // loop_header_branch
            %212 = sbr.rel (%p210) target = $region65
          $region62: #{reverse.0} parent=57 // loop_body
            %v216 = vld [vmem:[%s214] sm:$0xff]
            %217 = vst [vmem:[%s215] sm:$0xff] %v216
            %v218 = vld [vmem:[%s214 + $0x8] sm:$0xff]
            %219 = vst [vmem:[%s215 + $0x8] sm:$0xff] %v218
            %v220 = vld [vmem:[%s214 + $0x10] sm:$0xff]
            %221 = vst [vmem:[%s215 + $0x10] sm:$0xff] %v220
            %v222 = vld [vmem:[%s214 + $0x18] sm:$0xff]
            %223 = vst [vmem:[%s215 + $0x18] sm:$0xff] %v222
            %v224 = vld [vmem:[%s214 + $0x20] sm:$0xff]
            %225 = vst [vmem:[%s215 + $0x20] sm:$0xff] %v224
            %v226 = vld [vmem:[%s214 + $0x28] sm:$0xff]
            %227 = vst [vmem:[%s215 + $0x28] sm:$0xff] %v226
            %v228 = vld [vmem:[%s214 + $0x30] sm:$0xff]
            %229 = vst [vmem:[%s215 + $0x30] sm:$0xff] %v228
            %v230 = vld [vmem:[%s214 + $0x38] sm:$0xff]
            %231 = vst [vmem:[%s215 + $0x38] sm:$0xff] %v230
          $region63: #{reverse.0} parent=57 // loop_footer
            %s213 = sadd.s32 1, %s209
          $region64: #{reverse.0} parent=57 // loop_footer_branch
            %208 = sbr.rel target = $region60
          $region65: #{reverse.0} parent=57 // loop_exit
            _
        $region58: #{reverse.0} parent=42 // pred_fallthru
          _
        // Predicated region
        $region66: #{reverse.0} parent=42 // pred_check
          _
        $region67: #{reverse.0} parent=42 // pred_check_branch
          %233 = sbr.rel target = $region69
        $region68: #{reverse.0} parent=42 // pred_region
          _
        $region69: #{reverse.0} parent=42 // pred_fallthru
          _
      $region43: #{reverse.0} parent=38 // pred_fallthru
        _
      // Predicated region
      $region44: #{reverse.0} parent=38 // pred_check
        _
      $region45: #{reverse.0} parent=38 // pred_check_branch
        %179 = sbr.rel target = $region47
      $region46: #{reverse.0} parent=38 // pred_region
        %s181 = ssub.s32 256, 1
        loop: start=0, step=1, limit=1
        $region48: #{reverse.0} parent=46 // loop_pre_header
          _
        $region49: #{reverse.0} parent=46 // loop_header
          %s183 = sphi 0, %s187
          %p184 = scmp.ge.s32.totalorder %s183, 1
          %s188 = sphi [#allocation1], [#allocation1]
          %s189 = sphi %s1, %s1
        $region50: #{reverse.0} parent=46 // loop_header_branch
          %186 = sbr.rel (%p184) target = $region54
        $region51: #{reverse.0} parent=46 // loop_body
          %v190 = vld [vmem:[%s188] sm:%s181]
          %191 = vst [vmem:[%s189] sm:%s181] %v190
          %v192 = vld [vmem:[%s188 + $0x8] sm:%s181]
          %193 = vst [vmem:[%s189 + $0x8] sm:%s181] %v192
          %v194 = vld [vmem:[%s188 + $0x10] sm:%s181]
          %195 = vst [vmem:[%s189 + $0x10] sm:%s181] %v194
          %v196 = vld [vmem:[%s188 + $0x18] sm:%s181]
          %197 = vst [vmem:[%s189 + $0x18] sm:%s181] %v196
          %v198 = vld [vmem:[%s188 + $0x20] sm:%s181]
          %199 = vst [vmem:[%s189 + $0x20] sm:%s181] %v198
          %v200 = vld [vmem:[%s188 + $0x28] sm:%s181]
          %201 = vst [vmem:[%s189 + $0x28] sm:%s181] %v200
          %v202 = vld [vmem:[%s188 + $0x30] sm:%s181]
          %203 = vst [vmem:[%s189 + $0x30] sm:%s181] %v202
          %v204 = vld [vmem:[%s188 + $0x38] sm:%s181]
          %205 = vst [vmem:[%s189 + $0x38] sm:%s181] %v204
        $region52: #{reverse.0} parent=46 // loop_footer
          %s187 = sadd.s32 1, %s183
        $region53: #{reverse.0} parent=46 // loop_footer_branch
          %182 = sbr.rel target = $region49
        $region54: #{reverse.0} parent=46 // loop_exit
          _
      $region47: #{reverse.0} parent=38 // pred_fallthru
        _
    $region39: #{reverse.0} parent=1 // pred_fallthru
      _
    %234 = vnop

</llo_original>
